<compile_context>
chip_gen: v5e
topology: v5e:2x2
jax: 0.10.0
libtpu: 0.0.40
codegen_flags: <defaults>
</compile_context>

<pallas_src>
import jax
import jax.numpy as jnp
import numpy as np
from jax.experimental import pallas as pl
from jax.experimental.pallas import tpu as pltpu


def _fused_kernel(x_ref, w_ref, b_ref, out_ref):
    x = x_ref[...]          # (3, 100) full-res image: channel rows, flat 10x10 lanes
    w = w_ref[...]          # (5, 3)   conv weight
    b = b_ref[...]          # (5, 1)   conv bias

    # 1x1 conv at all 100 spatial positions == 3 broadcast FMAs on the VPU.
    conv = (w[:, 0:1] * x[0:1, :]
            + w[:, 1:2] * x[1:2, :]
            + w[:, 2:3] * x[2:3, :]
            + b)                                   # (5, 100)
    r = jnp.maximum(conv, 0.0)                     # ReLU

    # Stride-2 conv sampling + AvgPool2d(2), fused as shifted lane adds on the
    # full grid (flat idx = 10*row + col).  Each pooled 2x2 window of the
    # stride-2 conv output touches original positions {k, k+2, k+20, k+22}.
    t = r[:, 0:78] + r[:, 2:80]                    # column pairs 2 apart
    s = t[:, 0:58] + t[:, 20:78]                   # + row pairs 2 apart -> 4-tap sums
    # Pooled windows (per channel) sit at base flat index 0, 4, 40, 44.
    pooled = 0.25 * jnp.concatenate(
        [s[:, 0:1], s[:, 4:5], s[:, 40:41], s[:, 44:45]], axis=1)   # (5, 4)

    # Softmax over all 20 flattened features (row-major (5,4) == PyTorch view order).
    m = jnp.max(pooled)
    e = jnp.exp(pooled - m)
    denom = jnp.sum(e)
    out_ref[...] = e / denom                       # exact divide (see header)


@jax.jit
def model_forward(x, w, b):
    """x: (1, 3, 10, 10) f32 NCHW; w: (5, 3, 1, 1); b: (5,) -> (1, 20) softmax."""
    # All wrapper-side ops are free reshapes of contiguous buffers (no gathers,
    # no concats, no extra HBM intermediates).
    xs = x.reshape(3, 100).astype(jnp.float32)
    wf = w.reshape(5, 3).astype(jnp.float32)
    bf = b.reshape(5, 1).astype(jnp.float32)

    out = pl.pallas_call(
        _fused_kernel,
        out_shape=jax.ShapeDtypeStruct((5, 4), jnp.float32),
        in_specs=[
            pl.BlockSpec(memory_space=pltpu.MemorySpace.VMEM),
            pl.BlockSpec(memory_space=pltpu.MemorySpace.VMEM),
            pl.BlockSpec(memory_space=pltpu.MemorySpace.VMEM),
        ],
        out_specs=pl.BlockSpec(memory_space=pltpu.MemorySpace.VMEM),
    )(xs, wf, bf)

    return out.reshape(1, 20)


def _reference(x, w, b):
    """Pure-JAX reference of the same forward semantics (for correctness check)."""
    xs = x[0, :, ::2, ::2].astype(jnp.float32)                       # (3, 5, 5)
    conv = jnp.einsum("oc,chw->ohw", w.reshape(5, 3), xs) + b.reshape(5, 1, 1)
    v1 = jnp.maximum(conv, 0.0)                                      # (5, 5, 5)
    pooled = 0.25 * (v1[:, 0:4:2, 0:4:2] + v1[:, 0:4:2, 1:5:2]
                     + v1[:, 1:5:2, 0:4:2] + v1[:, 1:5:2, 1:5:2])    # (5, 2, 2)
    return jax.nn.softmax(pooled.reshape(1, 20), axis=-1)


if __name__ == "__main__":
    key = jax.random.PRNGKey(0)
    kx, kw, kb = jax.random.split(key, 3)

    # Input consistent with the module's global: torch.randn(1, 3, 10, 10)
    x = jax.random.normal(kx, (1, 3, 10, 10), dtype=jnp.float32)

    # Deterministic Conv2d(3, 5, 1) init (kaiming-uniform-style bounds, fan_in = 3)
    bound = 1.0 / np.sqrt(3.0)
    w = jax.random.uniform(kw, (5, 3, 1, 1), dtype=jnp.float32,
                           minval=-bound, maxval=bound)
    b = jax.random.uniform(kb, (5,), dtype=jnp.float32,
                           minval=-bound, maxval=bound)

    out = jax.block_until_ready(model_forward(x, w, b))

    assert out.shape == (1, 20)
    # Exact divide -> softmax row sums to 1 up to f32 rounding.
    assert abs(float(jnp.sum(out)) - 1.0) < 1e-4
    ref = _reference(x, w, b)
    assert jnp.allclose(out, ref, rtol=1e-4, atol=1e-6)

    print("KERNEL_OK")
</pallas_src>

<mosaic_0001>
module attributes {stable_mosaic.version = 11 : i64} {
  func.func @_fused_kernel(%arg0: memref<3x100xf32, #tpu.memory_space<vmem>>, %arg1: memref<5x3xf32, #tpu.memory_space<vmem>>, %arg2: memref<5x1xf32, #tpu.memory_space<vmem>>, %arg3: memref<5x4xf32, #tpu.memory_space<vmem>>) attributes {dimension_semantics = [], scalar_prefetch = 0 : i64, scratch_operands = 0 : i64, tpu.core_type = #tpu.core_type<tc>} {
    %c0 = arith.constant 0 : index
    %c0_0 = arith.constant 0 : index
    %0 = vector.load %arg0[%c0, %c0_0] : memref<3x100xf32, #tpu.memory_space<vmem>>, vector<3x100xf32>
    %c0_1 = arith.constant 0 : index
    %c0_2 = arith.constant 0 : index
    %1 = vector.load %arg1[%c0_1, %c0_2] : memref<5x3xf32, #tpu.memory_space<vmem>>, vector<5x3xf32>
    %c0_3 = arith.constant 0 : index
    %c0_4 = arith.constant 0 : index
    %2 = vector.load %arg2[%c0_3, %c0_4] : memref<5x1xf32, #tpu.memory_space<vmem>>, vector<5x1xf32>
    %3 = vector.extract_strided_slice %1 {offsets = [0, 0], sizes = [5, 1], strides = [1, 1]} : vector<5x3xf32> to vector<5x1xf32>
    %4 = vector.extract_strided_slice %0 {offsets = [0, 0], sizes = [1, 100], strides = [1, 1]} : vector<3x100xf32> to vector<1x100xf32>
    %5 = vector.broadcast %3 : vector<5x1xf32> to vector<5x100xf32>
    %6 = vector.broadcast %4 : vector<1x100xf32> to vector<5x100xf32>
    %7 = arith.mulf %5, %6 : vector<5x100xf32>
    %8 = vector.extract_strided_slice %1 {offsets = [0, 1], sizes = [5, 1], strides = [1, 1]} : vector<5x3xf32> to vector<5x1xf32>
    %9 = vector.extract_strided_slice %0 {offsets = [1, 0], sizes = [1, 100], strides = [1, 1]} : vector<3x100xf32> to vector<1x100xf32>
    %10 = vector.broadcast %8 : vector<5x1xf32> to vector<5x100xf32>
    %11 = vector.broadcast %9 : vector<1x100xf32> to vector<5x100xf32>
    %12 = arith.mulf %10, %11 : vector<5x100xf32>
    %13 = arith.addf %7, %12 : vector<5x100xf32>
    %14 = vector.extract_strided_slice %1 {offsets = [0, 2], sizes = [5, 1], strides = [1, 1]} : vector<5x3xf32> to vector<5x1xf32>
    %15 = vector.extract_strided_slice %0 {offsets = [2, 0], sizes = [1, 100], strides = [1, 1]} : vector<3x100xf32> to vector<1x100xf32>
    %16 = vector.broadcast %14 : vector<5x1xf32> to vector<5x100xf32>
    %17 = vector.broadcast %15 : vector<1x100xf32> to vector<5x100xf32>
    %18 = arith.mulf %16, %17 : vector<5x100xf32>
    %19 = arith.addf %13, %18 : vector<5x100xf32>
    %20 = vector.broadcast %2 : vector<5x1xf32> to vector<5x100xf32>
    %21 = arith.addf %19, %20 : vector<5x100xf32>
    %cst = arith.constant 0.000000e+00 : f32
    %22 = vector.broadcast %cst : f32 to vector<5x100xf32>
    %23 = arith.maximumf %21, %22 : vector<5x100xf32>
    %24 = vector.extract_strided_slice %23 {offsets = [0, 0], sizes = [5, 78], strides = [1, 1]} : vector<5x100xf32> to vector<5x78xf32>
    %25 = vector.extract_strided_slice %23 {offsets = [0, 2], sizes = [5, 78], strides = [1, 1]} : vector<5x100xf32> to vector<5x78xf32>
    %26 = arith.addf %24, %25 : vector<5x78xf32>
    %27 = vector.extract_strided_slice %26 {offsets = [0, 0], sizes = [5, 58], strides = [1, 1]} : vector<5x78xf32> to vector<5x58xf32>
    %28 = vector.extract_strided_slice %26 {offsets = [0, 20], sizes = [5, 58], strides = [1, 1]} : vector<5x78xf32> to vector<5x58xf32>
    %29 = arith.addf %27, %28 : vector<5x58xf32>
    %30 = vector.extract_strided_slice %29 {offsets = [0, 0], sizes = [5, 1], strides = [1, 1]} : vector<5x58xf32> to vector<5x1xf32>
    %31 = vector.extract_strided_slice %29 {offsets = [0, 4], sizes = [5, 1], strides = [1, 1]} : vector<5x58xf32> to vector<5x1xf32>
    %32 = vector.extract_strided_slice %29 {offsets = [0, 40], sizes = [5, 1], strides = [1, 1]} : vector<5x58xf32> to vector<5x1xf32>
    %33 = vector.extract_strided_slice %29 {offsets = [0, 44], sizes = [5, 1], strides = [1, 1]} : vector<5x58xf32> to vector<5x1xf32>
    %34 = tpu.concatenate %30, %31, %32, %33 in 1 : vector<5x1xf32>, vector<5x1xf32>, vector<5x1xf32>, vector<5x1xf32> -> vector<5x4xf32>
    %cst_5 = arith.constant 2.500000e-01 : f32
    %35 = vector.broadcast %cst_5 : f32 to vector<5x4xf32>
    %36 = arith.mulf %35, %34 : vector<5x4xf32>
    %37 = vector.shape_cast %36 : vector<5x4xf32> to vector<1x5x4xf32>
    %cst_6 = arith.constant dense<0xFF800000> : vector<1xf32>
    %38 = vector.multi_reduction <maximumf>, %37, %cst_6 [1, 2] : vector<1x5x4xf32> to vector<1xf32>
    %39 = vector.shape_cast %38 : vector<1xf32> to vector<1x1x1xf32>
    %40 = vector.extract %39[0, 0, 0] : f32 from vector<1x1x1xf32>
    %41 = vector.broadcast %40 : f32 to vector<5x4xf32>
    %42 = arith.subf %36, %41 : vector<5x4xf32>
    %43 = math.exp %42 : vector<5x4xf32>
    %44 = vector.shape_cast %43 : vector<5x4xf32> to vector<1x5x4xf32>
    %cst_7 = arith.constant dense<0.000000e+00> : vector<1xf32>
    %45 = vector.multi_reduction <add>, %44, %cst_7 [1, 2] : vector<1x5x4xf32> to vector<1xf32>
    %46 = vector.shape_cast %45 : vector<1xf32> to vector<1x1x1xf32>
    %47 = vector.extract %46[0, 0, 0] : f32 from vector<1x1x1xf32>
    %48 = vector.broadcast %47 : f32 to vector<5x4xf32>
    %49 = arith.divf %43, %48 : vector<5x4xf32>
    %c0_8 = arith.constant 0 : index
    %c0_9 = arith.constant 0 : index
    %50 = vector.load %arg3[%c0_8, %c0_9] : memref<5x4xf32, #tpu.memory_space<vmem>>, vector<5x4xf32>
    tpu.vector_store %arg3[%c0_8, %c0_9], %49 {strides = array<i32>} : memref<5x4xf32, #tpu.memory_space<vmem>>, vector<5x4xf32>,
    return
  }
}

</mosaic_0001>

<llo_original>
// kernel: model_forward.1
$region0: #{model_forward.1}
  #allocation0 [shape = 'u32[]', space=smem, size = 0x4, offset = 0x4, fixed_abs, tag = 'smem constant byte address 0x4 - core index']
  #allocation1 [shape = 'u32[72,128]{1,0:T(1,128)}', space=vmem, size = 0x9000, scoped, tag = 'internal scratch']
  %s0 = inlined_call_operand.vmem [shape: f32[3,100], index: 0, kind: input, shape index: {}]
  %s1 = inlined_call_operand.vmem [shape: f32[5,3], index: 1, kind: input, shape index: {}]
  %s2 = inlined_call_operand.vmem [shape: f32[5,1], index: 2, kind: input, shape index: {}]
  %s3 = inlined_call_operand.vmem [shape: f32[5,4], index: 3, kind: output, shape index: {}]
  %s4 = sld [smem:[#allocation0]]
  $region22: #{model_forward.1} parent=0
    _
  %s6 = ssub.s32 1, %s4
  %s7 = scalar_select 0, %s6, %s4
  // Predicated region
  $region2: #{model_forward.1} parent=0 // pred_check
    _
  $region3: #{model_forward.1} parent=0 // pred_check_branch
    %9 = sbr.rel (0) target = $region5
  $region4: #{model_forward.1} parent=0 // pred_region
    _
  $region5: #{model_forward.1} parent=0 // pred_fallthru
    _
  // Predicated region
  $region6: #{model_forward.1} parent=0 // pred_check
    _
  $region7: #{model_forward.1} parent=0 // pred_check_branch
    %11 = sbr.rel (0) target = $region9
  $region8: #{model_forward.1} parent=0 // pred_region
    _
  $region9: #{model_forward.1} parent=0 // pred_fallthru
    _
  // Predicated region
  $region10: #{model_forward.1} parent=0 // pred_check
    _
  $region11: #{model_forward.1} parent=0 // pred_check_branch
    %13 = sbr.rel (0) target = $region13
  $region12: #{model_forward.1} parent=0 // pred_region
    _
  $region13: #{model_forward.1} parent=0 // pred_fallthru
    _
  %v14 = vld [vmem:[%s0] sm:$0x7]
  %v15 = vld [vmem:[%s1] sm:$0x1f]
  %v16 = vld [vmem:[%s2] sm:$0x1f]
  %18 = vset.pattern.permute.xlu0 0
  %19 = vperm.xlu0 %18, %v15
  %v20 = vpop.permute.xlu0 %19
  %v22 = vperm.slane %v14, 0
  %v23 = vmul.f32 %v20, %v22
  %24 = vset.pattern.permute.xlu0 1
  %25 = vperm.xlu0 %24, %v15
  %v26 = vpop.permute.xlu0 %25
  %v28 = vperm.slane %v14, 1
  %v29 = vmul.f32 %v26, %v28
  %v30 = vadd.f32 %v23, %v29
  %31 = vset.pattern.permute.xlu0 2
  %32 = vperm.xlu0 %31, %v15
  %v33 = vpop.permute.xlu0 %32
  %v35 = vperm.slane %v14, 2
  %v36 = vmul.f32 %v33, %v35
  %v37 = vadd.f32 %v30, %v36
  %39 = vset.pattern.permute.xlu0 0
  %40 = vperm.xlu0 %39, %v16
  %v41 = vpop.permute.xlu0 %40
  %v43 = vadd.f32 %v37, %v41
  %v44 = vmax.f32 %v43, 0.0
  %46 = vrot.lane.b32.xlu0 %v44, 126
  %v47 = vpop.permute.xlu0 %46
  %v49 = vadd.f32 %v44, %v47
  %51 = vrot.lane.b32.xlu0 %v49, 108
  %v52 = vpop.permute.xlu0 %51
  %v54 = vadd.f32 %v49, %v52
  %56 = vrot.lane.b32.xlu0 %v54, 125
  %v57 = vpop.permute.xlu0 %56
  %59 = vrot.lane.b32.xlu0 %v54, 90
  %v60 = vpop.permute.xlu0 %59
  %62 = vrot.lane.b32.xlu0 %v54, 87
  %v63 = vpop.permute.xlu0 %62
  %vm65 = vcmask 7168
  %v66 = vsel %vm65, %v54, %v57
  %vm67 = vcmask 15360
  %v68 = vsel %vm67, %v66, %v60
  %vm69 = vcmask 23552
  %v70 = vsel %vm69, %v68, %v63
  %v71 = vmul.f32 %v70, 0.25
  %vm72 = vcmask 28672
  %v73 = vsel %vm72, %v71, -inf
  %74 = vmax.xlane.f32.xlu0 %v73
  %v75 = vpop.xlane.xlu0 %74
  %v76 = vrot.slane %v75, 4
  %v77 = vmax.f32 %v75, %v76
  %v78 = vrot.slane %v77, 2
  %v79 = vmax.f32 %v77, %v78
  %v80 = vrot.slane %v79, 1
  %v81 = vmax.f32 %v79, %v80
  %s82 = vtos %v81
  %v83 = vstv %s82
  %v84 = vsub.f32 %v71, %v83
  %v85 = vmul.f32 %v84, 1.442695
  %v86 = vpow.pop %v85
  %v87 = vsel %vm72, %v86, 0.0
  %88 = vadd.xlane.f32.xlu0 %v87
  %v89 = vpop.xlane.xlu0 %88
  %v90 = vrot.slane %v89, 4
  %v91 = vadd.f32 %v89, %v90
  %v92 = vrot.slane %v91, 2
  %v93 = vadd.f32 %v91, %v92
  %v94 = vrot.slane %v93, 1
  %v95 = vadd.f32 %v93, %v94
  %s96 = vtos %v95
  %v97 = vstv %s96
  %v98 = vrcp.pop %v97
  %v99 = vmul.f32 %v97, %v98
  %v100 = vsub.f32 1.0, %v99
  %v101 = vmul.f32 %v98, %v100
  %v102 = vadd.f32 %v98, %v101
  %vm103 = vweird.f32 %v97
  %vm104 = vweird.f32 %v98
  %vm105 = vmor %vm103, %vm104
  %v106 = vsel %vm105, %v98, %v102
  %v107 = vand.u32 2147483647, %v97
  %vm108 = vcmp.eq.f32.partialorder %v107, 8.507059e+37
  %v109 = vand.u32 %v97, 2147483648
  %v110 = vor.u32 1.1754944e-38, %v109
  %v111 = vsel %vm108, %v110, %v106
  %v112 = vmul.f32 %v86, %v111
  %113 = vst.msk [vmem:[%s3] sm:$0x1f] %vm72, %v112
  // Predicated region
  $region14: #{model_forward.1} parent=0 // pred_check
    _
  $region15: #{model_forward.1} parent=0 // pred_check_branch
    %115 = sbr.rel (0) target = $region17
  $region16: #{model_forward.1} parent=0 // pred_region
    _
  $region17: #{model_forward.1} parent=0 // pred_fallthru
    _
  // Predicated region
  $region18: #{model_forward.1} parent=0 // pred_check
    _
  $region19: #{model_forward.1} parent=0 // pred_check_branch
    %117 = sbr.rel (0) target = $region21
  $region20: #{model_forward.1} parent=0 // pred_region
    _
  $region21: #{model_forward.1} parent=0 // pred_fallthru
    _

</llo_original>
